<compile_context>
chip_gen: v6e
topology: v6e:2x2x1
jax: 0.10.0
libtpu: 0.0.40
codegen_flags: <defaults>
</compile_context>

<pallas_src>
import math
import jax
import jax.numpy as jnp
from jax import lax
from jax.experimental import pallas as pl
from jax.experimental.pallas import tpu as pltpu


_VMEM_LIMIT = 48 * 1024 * 1024  # explicit budget: headroom on v7x (64 MiB physical)


def _fit(dim, preferred):
    """Largest tile <= preferred that divides dim (falls back to the full dim)."""
    if dim <= preferred:
        return dim
    t = preferred
    while t > 8 and dim % t != 0:
        t //= 2
    return t if dim % t == 0 else dim


# ---------------------------------------------------------------------------
# Tiled linear: (M, K) @ (K, N) -> (M, N); bf16 inputs, f32 accumulation
# ---------------------------------------------------------------------------
def _matmul_kernel(x_ref, w_ref, o_ref, acc_ref):
    @pl.when(pl.program_id(2) == 0)
    def _():
        acc_ref[...] = jnp.zeros(acc_ref.shape, jnp.float32)

    acc_ref[...] += jnp.dot(x_ref[...], w_ref[...],
                            preferred_element_type=jnp.float32)

    @pl.when(pl.program_id(2) == pl.num_programs(2) - 1)
    def _():
        o_ref[...] = acc_ref[...].astype(o_ref.dtype)


def pallas_linear(x2d, w, out_dtype=jnp.bfloat16, tm=256, tn=256, tk=512):
    M, K = x2d.shape
    K2, N = w.shape
    assert K == K2
    tm, tn, tk = _fit(M, tm), _fit(N, tn), _fit(K, tk)
    grid = (M // tm, N // tn, K // tk)
    return pl.pallas_call(
        _matmul_kernel,
        out_shape=jax.ShapeDtypeStruct((M, N), out_dtype),
        grid=grid,
        in_specs=[
            pl.BlockSpec((tm, tk), lambda i, j, k: (i, k)),
            pl.BlockSpec((tk, tn), lambda i, j, k: (k, j)),
        ],
        out_specs=pl.BlockSpec((tm, tn), lambda i, j, k: (i, j)),
        scratch_shapes=[pltpu.VMEM((tm, tn), jnp.float32)],
        compiler_params=pltpu.CompilerParams(
            dimension_semantics=("parallel", "parallel", "arbitrary"),
            vmem_limit_bytes=_VMEM_LIMIT),
    )(x2d, w)


# ---------------------------------------------------------------------------
# Flash attention kernel (all heads of one (q-block, kv-block) tile per step)
# ---------------------------------------------------------------------------
def _rope2d(x, cos_full, sin_signed):
    """x: (T, D) with head_dim layout [real-half | imag-half] (permutation folded
    into the projection weights). cos_full/sin_signed: (T, D) f32 full-width tables
    (cos duplicated; sin sign-flipped on the first half), so RoPE is
    x*cos + rotate_half(x)*sin with no narrow-vreg concat of results."""
    xf = x.astype(jnp.float32)
    D = xf.shape[-1]
    h = D // 2
    if D % 128 == 0:
        rolled = pltpu.roll(xf, shift=h, axis=1)          # XLU lane rotate (free-ish)
    else:
        rolled = jnp.concatenate([xf[:, h:], xf[:, :h]], axis=-1)  # tiny-D fallback
    return xf * cos_full + rolled * sin_signed


def _flash_attn_kernel(q_ref, k_ref, v_ref, cos_q_ref, sin_q_ref,
                       cos_k_ref, sin_k_ref, o_ref, m_ref, l_ref, acc_ref):
    # blocks: q (tq,H,D) bf16 ; k/v (tk,H,D) bf16 ; cos/sin (t,D) f32 ; o (tq,H,D)
    qi = pl.program_id(1)
    ki = pl.program_id(2)
    tq, H, D = q_ref.shape
    tk = k_ref.shape[0]
    sm_scale = 1.0 / math.sqrt(D)

    @pl.when(ki == 0)
    def _init():
        m_ref[...] = jnp.full(m_ref.shape, -jnp.inf, jnp.float32)
        l_ref[...] = jnp.zeros(l_ref.shape, jnp.float32)
        acc_ref[...] = jnp.zeros(acc_ref.shape, jnp.float32)

    # Skip KV blocks that lie entirely in the causally-masked future.
    @pl.when(ki * tk <= qi * tq + (tq - 1))
    def _compute():
        cos_q = cos_q_ref[...]
        sin_q = sin_q_ref[...]
        cos_k = cos_k_ref[...]
        sin_k = sin_k_ref[...]
        # in-kernel causal mask for this (tq, tk) tile
        row = qi * tq + lax.broadcasted_iota(jnp.int32, (tq, tk), 0)
        col = ki * tk + lax.broadcasted_iota(jnp.int32, (tq, tk), 1)
        masked = col > row

        for hh in range(H):  # static unroll over heads; KV tile reused for all heads
            q_h = _rope2d(q_ref[:, hh, :], cos_q, sin_q).astype(jnp.bfloat16)
            k_h = _rope2d(k_ref[:, hh, :], cos_k, sin_k).astype(jnp.bfloat16)
            v_h = v_ref[:, hh, :]

            s = jnp.dot(q_h, k_h.T,
                        preferred_element_type=jnp.float32) * sm_scale  # (tq, tk)
            s = jnp.where(masked, -jnp.inf, s)

            m_prev = m_ref[hh]                                  # (tq, 1)
            m_new = jnp.maximum(m_prev, s.max(axis=-1, keepdims=True))
            alpha = jnp.exp(m_prev - m_new)
            p = jnp.exp(s - m_new)
            l_ref[hh] = alpha * l_ref[hh] + p.sum(axis=-1, keepdims=True)
            acc_ref[hh] = alpha * acc_ref[hh] + jnp.dot(
                p.astype(jnp.bfloat16), v_h, preferred_element_type=jnp.float32)
            m_ref[hh] = m_new

    @pl.when(ki == pl.num_programs(2) - 1)
    def _finalize():
        inv_l = pl.reciprocal(l_ref[...], approx=True)          # (H, tq, 1) on EUP
        for hh in range(H):
            o_ref[:, hh, :] = (acc_ref[hh] * inv_l[hh]).astype(o_ref.dtype)


def pallas_flash_attention(qkv, cos_full, sin_signed, tq=128, tk=128):
    """qkv: (B, S, 3, H, D) bf16; cos/sin: (S, D) f32 -> (B, S, H, D) bf16."""
    B, S, _three, H, D = qkv.shape
    tq = _fit(S, tq)
    tk = _fit(S, tk)
    grid = (B, S // tq, S // tk)
    return pl.pallas_call(
        _flash_attn_kernel,
        out_shape=jax.ShapeDtypeStruct((B, S, H, D), jnp.bfloat16),
        grid=grid,
        in_specs=[
            # q / k / v are three views into the same fused-projection output
            pl.BlockSpec((None, tq, None, H, D), lambda b, qi, ki: (b, qi, 0, 0, 0)),
            pl.BlockSpec((None, tk, None, H, D), lambda b, qi, ki: (b, ki, 1, 0, 0)),
            pl.BlockSpec((None, tk, None, H, D), lambda b, qi, ki: (b, ki, 2, 0, 0)),
            pl.BlockSpec((tq, D), lambda b, qi, ki: (qi, 0)),   # cos at q positions
            pl.BlockSpec((tq, D), lambda b, qi, ki: (qi, 0)),   # sin at q positions
            pl.BlockSpec((tk, D), lambda b, qi, ki: (ki, 0)),   # cos at k positions
            pl.BlockSpec((tk, D), lambda b, qi, ki: (ki, 0)),   # sin at k positions
        ],
        out_specs=pl.BlockSpec((None, tq, H, D), lambda b, qi, ki: (b, qi, 0, 0)),
        scratch_shapes=[
            pltpu.VMEM((H, tq, 1), jnp.float32),   # running max
            pltpu.VMEM((H, tq, 1), jnp.float32),   # running sum
            pltpu.VMEM((H, tq, D), jnp.float32),   # output accumulator
        ],
        compiler_params=pltpu.CompilerParams(
            dimension_semantics=("parallel", "parallel", "arbitrary"),
            vmem_limit_bytes=_VMEM_LIMIT),
    )(qkv, qkv, qkv, cos_full, sin_signed, cos_full, sin_signed)


# ---------------------------------------------------------------------------
# Full Attention.forward
# ---------------------------------------------------------------------------
def attention_forward(x, wq, wk, wv, wo, cos, sin, n_heads):
    B, S, dim = x.shape
    H = n_heads
    D = dim // n_heads

    # Fold the interleaved->split-halves RoPE permutation into the q/k weight rows
    # (output features) and fuse q/k/v into one (dim, 3*dim) projection.
    perm_head = jnp.concatenate([jnp.arange(0, D, 2), jnp.arange(1, D, 2)])
    full_perm = (jnp.arange(H)[:, None] * D + perm_head[None, :]).reshape(-1)
    w_qkv = jnp.concatenate([wq[full_perm], wk[full_perm], wv], axis=0)  # (3*dim, dim)

    x2d = x.reshape(B * S, dim).astype(jnp.bfloat16)
    qkv = pallas_linear(x2d, w_qkv.T.astype(jnp.bfloat16), out_dtype=jnp.bfloat16)
    qkv = qkv.reshape(B, S, 3, H, D)                 # (B, S, H, D) layout: no transposes

    # Full-width RoPE tables: cos duplicated over both halves, sin sign-flipped on
    # the first half -> in-kernel RoPE is x*cos + rotate_half(x)*sin.
    cos_full = jnp.concatenate([cos, cos], axis=-1).astype(jnp.float32)      # (S, D)
    sin_signed = jnp.concatenate([-sin, sin], axis=-1).astype(jnp.float32)   # (S, D)

    out = pallas_flash_attention(qkv, cos_full, sin_signed)  # (B, S, H, D) bf16
    out2d = out.reshape(B * S, H * D)                        # pure reshape (no transpose)
    out = pallas_linear(out2d, wo.T.astype(jnp.bfloat16), out_dtype=jnp.float32)
    return out.reshape(B, S, dim)
    # TODO(synk): dropout has p=0.0 in ModelArgs (identity, omitted); start_pos/KV-cache
    # and non-causal external masks are not modeled (causal mask is generated in-kernel).


# ---------------------------------------------------------------------------
# Pure-JAX fp32 reference (mirrors the PyTorch module, interleaved RoPE)
# ---------------------------------------------------------------------------
def reference_forward(x, wq, wk, wv, wo, cos, sin, mask, n_heads):
    B, S, dim = x.shape
    D = dim // n_heads
    xq = (x @ wq.T).reshape(B, S, n_heads, D)
    xk = (x @ wk.T).reshape(B, S, n_heads, D)
    xv = (x @ wv.T).reshape(B, S, n_heads, D)

    def rope(t):
        tr, ti = t[..., 0::2], t[..., 1::2]
        c = cos[None, :, None, :]
        s = sin[None, :, None, :]
        outr = tr * c - ti * s
        outi = tr * s + ti * c
        return jnp.stack([outr, outi], axis=-1).reshape(t.shape)

    q = rope(xq).transpose(0, 2, 1, 3)
    k = rope(xk).transpose(0, 2, 1, 3)
    v = xv.transpose(0, 2, 1, 3)
    scores = (q @ k.transpose(0, 1, 3, 2)) / math.sqrt(D) + mask[None, None]
    p = jax.nn.softmax(scores, axis=-1)
    out = (p @ v).transpose(0, 2, 1, 3).reshape(B, S, dim)
    return out @ wo.T


# ---------------------------------------------------------------------------
if __name__ == "__main__":
    # small config: dim=32, n_heads=4 (head_dim=8), batch=2, seq=8
    B, S, dim, n_heads = 2, 8, 32, 4
    head_dim = dim // n_heads

    key = jax.random.PRNGKey(0)
    kx, kq, kk, kv, ko = jax.random.split(key, 5)
    x = jax.random.normal(kx, (B, S, dim), dtype=jnp.float32)
    scale = 1.0 / math.sqrt(dim)
    wq = jax.random.normal(kq, (dim, dim), dtype=jnp.float32) * scale
    wk = jax.random.normal(kk, (dim, dim), dtype=jnp.float32) * scale
    wv = jax.random.normal(kv, (dim, dim), dtype=jnp.float32) * scale
    wo = jax.random.normal(ko, (dim, dim), dtype=jnp.float32) * scale

    # precompute_freqs_cis (llama): theta = 10000
    freqs = 1.0 / (10000.0 ** (jnp.arange(0, head_dim, 2, dtype=jnp.float32) / head_dim))
    t = jnp.arange(S, dtype=jnp.float32)
    angles = jnp.outer(t, freqs)                    # (S, head_dim//2)
    cos, sin = jnp.cos(angles), jnp.sin(angles)

    out = attention_forward(x, wq, wk, wv, wo, cos, sin, n_heads)
    out = jax.block_until_ready(out)

    # reference uses the explicit causal mask, exactly as llama builds it
    mask = jnp.triu(jnp.full((S, S), float("-inf"), dtype=jnp.float32), k=1)
    ref = reference_forward(x, wq, wk, wv, wo, cos, sin, mask, n_heads)

    assert out.shape == (B, S, dim)
    # tolerance loosened vs fp32 reference because matmul inputs are bf16 (f32 accumulate)
    assert jnp.allclose(out, ref, atol=7e-2, rtol=7e-2), "mismatch vs reference"

    print("KERNEL_OK")
</pallas_src>

<mosaic_0001>
module attributes {stable_mosaic.version = 11 : i64} {
  func.func @_matmul_kernel(%arg0: i32, %arg1: i32, %arg2: i32, %arg3: memref<16x32xbf16, #tpu.memory_space<vmem>>, %arg4: memref<32x96xbf16, #tpu.memory_space<vmem>>, %arg5: memref<16x96xbf16, #tpu.memory_space<vmem>>, %arg6: memref<16x96xf32, #tpu.memory_space<vmem>>) attributes {dimension_semantics = [#tpu.dimension_semantics<parallel>, #tpu.dimension_semantics<parallel>, #tpu.dimension_semantics<arbitrary>], iteration_bounds = array<i64: 1, 1, 1>, scalar_prefetch = 0 : i64, scratch_operands = 1 : i64, tpu.core_type = #tpu.core_type<tc>, window_params = [{transform_indices = @transform_0, window_bounds = array<i64: 16, 32>}, {transform_indices = @transform_1, window_bounds = array<i64: 32, 96>}, {transform_indices = @transform_2, window_bounds = array<i64: 16, 96>}]} {
    %c0_i32 = arith.constant 0 : i32
    %0 = arith.cmpi eq, %arg2, %c0_i32 : i32
    %1 = arith.extui %0 : i1 to i32
    %c0_i32_0 = arith.constant 0 : i32
    %2 = arith.cmpi ne, %1, %c0_i32_0 : i32
    scf.if %2 {
      %cst_10 = arith.constant 0.000000e+00 : f32
      %12 = vector.broadcast %cst_10 : f32 to vector<16x96xf32>
      %c0_11 = arith.constant 0 : index
      %c0_12 = arith.constant 0 : index
      %13 = vector.load %arg6[%c0_11, %c0_12] : memref<16x96xf32, #tpu.memory_space<vmem>>, vector<16x96xf32>
      tpu.vector_store %arg6[%c0_11, %c0_12], %12 {strides = array<i32>} : memref<16x96xf32, #tpu.memory_space<vmem>>, vector<16x96xf32>,
    } else {
    }
    %c0 = arith.constant 0 : index
    %c0_1 = arith.constant 0 : index
    %3 = vector.load %arg6[%c0, %c0_1] : memref<16x96xf32, #tpu.memory_space<vmem>>, vector<16x96xf32>
    %c0_2 = arith.constant 0 : index
    %c0_3 = arith.constant 0 : index
    %4 = vector.load %arg3[%c0_2, %c0_3] : memref<16x32xbf16, #tpu.memory_space<vmem>>, vector<16x32xbf16>
    %c0_4 = arith.constant 0 : index
    %c0_5 = arith.constant 0 : index
    %5 = vector.load %arg4[%c0_4, %c0_5] : memref<32x96xbf16, #tpu.memory_space<vmem>>, vector<32x96xbf16>
    %cst = arith.constant dense<0.000000e+00> : vector<16x96xf32>
    %6 = tpu.matmul %4, %5, %cst {dimension_numbers = #tpu.dot_dimension_numbers<[1], [0], [0], [1], [0, 0, 1, 1], [], []>} : vector<16x32xbf16>, vector<32x96xbf16>, vector<16x96xf32> -> vector<16x96xf32>
    %7 = arith.addf %3, %6 : vector<16x96xf32>
    %c0_6 = arith.constant 0 : index
    %c0_7 = arith.constant 0 : index
    %8 = vector.load %arg6[%c0_6, %c0_7] : memref<16x96xf32, #tpu.memory_space<vmem>>, vector<16x96xf32>
    tpu.vector_store %arg6[%c0_6, %c0_7], %7 {strides = array<i32>} : memref<16x96xf32, #tpu.memory_space<vmem>>, vector<16x96xf32>,
    %c0_i32_8 = arith.constant 0 : i32
    %9 = arith.cmpi eq, %arg2, %c0_i32_8 : i32
    %10 = arith.extui %9 : i1 to i32
    %c0_i32_9 = arith.constant 0 : i32
    %11 = arith.cmpi ne, %10, %c0_i32_9 : i32
    scf.if %11 {
      %c0_10 = arith.constant 0 : index
      %c0_11 = arith.constant 0 : index
      %12 = vector.load %arg6[%c0_10, %c0_11] : memref<16x96xf32, #tpu.memory_space<vmem>>, vector<16x96xf32>
      %13 = arith.truncf %12 : vector<16x96xf32> to vector<16x96xbf16>
      %c0_12 = arith.constant 0 : index
      %c0_13 = arith.constant 0 : index
      %14 = vector.load %arg5[%c0_12, %c0_13] : memref<16x96xbf16, #tpu.memory_space<vmem>>, vector<16x96xbf16>
      tpu.vector_store %arg5[%c0_12, %c0_13], %13 {strides = array<i32>} : memref<16x96xbf16, #tpu.memory_space<vmem>>, vector<16x96xbf16>,
    } else {
    }
    return
  }
  func.func @transform_0(%arg0: i32, %arg1: i32, %arg2: i32) -> (i32, i32) {
    %c0_i32 = arith.constant 0 : i32
    return %arg0, %arg2 : i32, i32
  }
  func.func @transform_1(%arg0: i32, %arg1: i32, %arg2: i32) -> (i32, i32) {
    %c0_i32 = arith.constant 0 : i32
    return %arg2, %arg1 : i32, i32
  }
  func.func @transform_2(%arg0: i32, %arg1: i32, %arg2: i32) -> (i32, i32) {
    %c0_i32 = arith.constant 0 : i32
    return %arg0, %arg1 : i32, i32
  }
}

</mosaic_0001>

<llo_original>
// kernel: tpu_custom_call.1
$region0: #{tpu_custom_call.1}
  #allocation0 [shape = 'u32[]', space=smem, size = 0x4, offset = 0x4, fixed_abs, tag = 'smem constant byte address 0x4 - core index']
  #allocation1 [shape = 'u32[144,128]{1,0:T(1,128)}', space=vmem, size = 0x12000, scoped, tag = 'internal scratch']
  #allocation2 [shape = 'f32[16,96]{1,0:T(8,128)}', space=vmem, size = 0x2000, scoped, tag = 'scratch operand']
  %s0 = inlined_call_operand.hbm [shape: bf16[16,32], index: 0, kind: input, shape index: {}]
  %s1 = inlined_call_operand.hbm [shape: bf16[32,96], index: 1, kind: input, shape index: {}]
  %s2 = inlined_call_operand.hbm [shape: bf16[16,96], index: 2, kind: output, shape index: {}]
  %s3 = sld [smem:[#allocation0]]
  $region34: #{tpu_custom_call.1} parent=0
    _
  %s5 = ssub.s32 1, %s3
  %s6 = scalar_select 0, %s5, %s3
  $region1: #{tpu_custom_call.1} parent=0
    #allocation3 [shape = 'u8[4096]{0}', space=vmem, size = 0x1000, scoped, tag = 'input window, operand 0, single buffered']
    #allocation4 [shape = 's32[1]{0}', space=sflag, size = 0x4, scoped, tag = 'scoped memory for tpu_custom_call.1']
    #allocation5 [shape = 's32[1]{0}', space=sflag, size = 0x4, scoped, tag = 'scoped memory for tpu_custom_call.1']
    #allocation6 [shape = 'u8[8192]{0}', space=vmem, size = 0x2000, scoped, tag = 'input window, operand 1, single buffered']
    #allocation7 [shape = 's32[1]{0}', space=sflag, size = 0x4, scoped, tag = 'scoped memory for tpu_custom_call.1']
    #allocation8 [shape = 'u8[4096]{0}', space=vmem, size = 0x1000, scoped, tag = 'output window, operand 0, single buffered']
    %7 = vsyncpa [#allocation4], 0
    %8 = vsyncpa [#allocation7], 0
    %9 = vsyncpa [#allocation5], 0
    // Predicated region
    $region2: #{tpu_custom_call.1} parent=1 // pred_check
      _
    $region3: #{tpu_custom_call.1} parent=1 // pred_check_branch
      %11 = sbr.rel (0) target = $region5
    $region4: #{tpu_custom_call.1} parent=1 // pred_region
      %s13 = ssub.s32 128, 128
      %14 = vsyncadd [#allocation4], %s13
      %s15 = sshll.u32 [#allocation3], 4
      %s16 = int_to_ptr.vmem [resolvable:$true] %s15
      %21 = dma.hbm_to_vmem [thread:$0]  %s0, 128, %s16, [#allocation4], 64, 64, 4
    $region5: #{tpu_custom_call.1} parent=1 // pred_fallthru
      _
    // Predicated region
    $region6: #{tpu_custom_call.1} parent=1 // pred_check
      _
    $region7: #{tpu_custom_call.1} parent=1 // pred_check_branch
      %23 = sbr.rel (0) target = $region9
    $region8: #{tpu_custom_call.1} parent=1 // pred_region
      %s25 = ssub.s32 256, 256
      %26 = vsyncadd [#allocation7], %s25
      %s27 = sshll.u32 [#allocation6], 4
      %s28 = int_to_ptr.vmem [resolvable:$true] %s27
      %33 = dma.hbm_to_vmem [thread:$0]  %s1, 256, %s28, [#allocation7], 64, 64, 4
    $region9: #{tpu_custom_call.1} parent=1 // pred_fallthru
      _
    // Predicated region
    $region10: #{tpu_custom_call.1} parent=1 // pred_check
      _
    $region11: #{tpu_custom_call.1} parent=1 // pred_check_branch
      %35 = sbr.rel (0) target = $region13
    $region12: #{tpu_custom_call.1} parent=1 // pred_region
      %36 = dma.done [#allocation4], 128
    $region13: #{tpu_custom_call.1} parent=1 // pred_fallthru
      _
    // Predicated region
    $region14: #{tpu_custom_call.1} parent=1 // pred_check
      _
    $region15: #{tpu_custom_call.1} parent=1 // pred_check_branch
      %38 = sbr.rel (0) target = $region17
    $region16: #{tpu_custom_call.1} parent=1 // pred_region
      %39 = dma.done [#allocation7], 256
    $region17: #{tpu_custom_call.1} parent=1 // pred_fallthru
      _
    %p41 = scmp.eq.s32.totalorder 0, 0
    // Predicated region
    $region18: #{tpu_custom_call.1} parent=1 // pred_check
      %p42 = pneg %p41
    $region19: #{tpu_custom_call.1} parent=1 // pred_check_branch
      %44 = sbr.rel (%p42) target = $region21
    $region20: #{tpu_custom_call.1} parent=1 // pred_region
      %vm45 = vcmask 785408
      %46 = vst.msk [vmem:[#allocation2] sm:$0xff] %vm45, 0.0
      %47 = vst.msk [vmem:[#allocation2 + $0x8] sm:$0xff] %vm45, 0.0
    $region21: #{tpu_custom_call.1} parent=1 // pred_fallthru
      _
    %v48 = vld [vmem:[#allocation2] sm:$0xff]
    %v49 = vld [vmem:[#allocation2 + $0x8] sm:$0xff]
    %v50 = vld [vmem:[#allocation3] sm:$0xf]
    %v51 = vld [vmem:[#allocation3 + $0x4] sm:$0xf]
    %v52 = vld [vmem:[#allocation6] sm:$0xf]
    %v53 = vld [vmem:[#allocation6 + $0x4] sm:$0xf]
    %v54 = vld [vmem:[#allocation6 + $0x8] sm:$0xf]
    %v55 = vld [vmem:[#allocation6 + $0xc] sm:$0xf]
    %v58 = vunpack.c.l.b16 %v50
    %v59 = vunpack.c.l.b16 %v51
    %v60 = vpack.c.b16 %v59, %v58
    %v65 = vunpack.c.l.b16 %v52
    %v66 = vunpack.c.l.b16 %v53
    %v67 = vunpack.c.l.b16 %v54
    %v68 = vunpack.c.l.b16 %v55
    %v69 = vpack.c.b16 %v66, %v65
    %v70 = vpack.c.b16 %v68, %v67
    %vm73 = vcmask 261120
    %v75 = vsel %vm73, %v60, 0
    %77 = vmatprep.subr.bf16.mxu0 0
    %78 = vmatpush1.bf16.msra.mxu0 0
    %79 = vmatprep.subr.bf16.mxu0 0
    %80 = vmatpush1.bf16.msra.mxu0 0
    %81 = vmatprep.subr.bf16.mxu0 0
    %82 = vmatpush1.bf16.msra.mxu0 0
    %83 = vmatprep.subr.bf16.mxu0 0
    %84 = vmatpush1.bf16.msra.mxu0 0
    %85 = vmatprep.subr.bf16.mxu0 0
    %86 = vmatpush1.bf16.msra.mxu0 0
    %87 = vmatprep.subr.bf16.mxu0 0
    %88 = vmatpush1.bf16.msra.mxu0 0
    %89 = vmatprep.subr.bf16.mxu0 0
    %90 = vmatpush1.bf16.msra.mxu0 %v70
    %91 = vmatprep.subr.bf16.mxu0 0
    %92 = vmatpush1.bf16.msra.mxu0 %v69
    %93 = vmatprep.subr.bf16.mxu0 0
    %94 = vmatpush2.bf16.msra.mxu0 0
    %95 = vmatprep.subr.bf16.mxu0 0
    %96 = vmatpush2.bf16.msra.mxu0 0
    %97 = vmatprep.subr.bf16.mxu0 0
    %98 = vmatpush2.bf16.msra.mxu0 0
    %99 = vmatprep.subr.bf16.mxu0 0
    %100 = vmatpush2.bf16.msra.mxu0 0
    %101 = vmatprep.subr.bf16.mxu0 0
    %102 = vmatpush2.bf16.msra.mxu0 0
    %103 = vmatprep.subr.bf16.mxu0 0
    %104 = vmatpush2.bf16.msra.mxu0 0
    %105 = vmatprep.subr.bf16.mxu0 0
    %106 = vmatpush2.bf16.msra.mxu0 0
    %107 = vmatprep.subr.bf16.mxu0 0
    %108 = vmatpush2.bf16.msra.mxu0 0
    %109 = vmatprep.mubr.bf16.mxu0 0
    %110 = vmatmul.mubr.bf16.gmra.mxu0 %v75
    %v111 = vpop.f32.mrf.mxu0
    %v112 = vadd.f32 0.0, %v111
    %v113 = vpop.f32.mrf.mxu0
    %v114 = vpop.f32.mrf.mxu0
    %v115 = vadd.f32 0.0, %v114
    %v116 = vpop.f32.mrf.mxu0
    %117 = vdwg.mxu0
    %v118 = vadd.f32 %v48, %v112
    %v119 = vadd.f32 %v49, %v115
    %vm120 = vcmask 785408
    %121 = vst.msk [vmem:[#allocation2] sm:$0xff] %vm120, %v118
    %122 = vst.msk [vmem:[#allocation2 + $0x8] sm:$0xff] %vm120, %v119
    // Predicated region
    $region22: #{tpu_custom_call.1} parent=1 // pred_check
      %p123 = pneg %p41
    $region23: #{tpu_custom_call.1} parent=1 // pred_check_branch
      %125 = sbr.rel (%p123) target = $region25
    $region24: #{tpu_custom_call.1} parent=1 // pred_region
      %v126 = vld [vmem:[#allocation2] sm:$0xff]
      %v127 = vld [vmem:[#allocation2 + $0x8] sm:$0xff]
      %v128 = vpack.c.bf16 %v127, %v126
      %v130 = vunpack.c.l.b16 %v128
      %v131 = vunpack.c.h.b16 %v128
      %v132 = vpack.c.b16 %v130, %v130
      %v133 = vpack.c.b16 %v131, %v131
      %vm136 = vcmask 781312
      %137 = vst.msk [vmem:[#allocation8] sm:$0xf] %vm136, %v132
      %138 = vst.msk [vmem:[#allocation8 + $0x4] sm:$0xf] %vm136, %v133
    $region25: #{tpu_custom_call.1} parent=1 // pred_fallthru
      _
    // Predicated region
    $region26: #{tpu_custom_call.1} parent=1 // pred_check
      _
    $region27: #{tpu_custom_call.1} parent=1 // pred_check_branch
      %140 = sbr.rel (0) target = $region29
    $region28: #{tpu_custom_call.1} parent=1 // pred_region
      %s142 = ssub.s32 128, 128
      %143 = vsyncadd [#allocation5], %s142
      %s144 = sshll.u32 [#allocation8], 4
      %s145 = int_to_ptr.vmem [resolvable:$true] %s144
      %150 = dma.vmem_to_hbm [thread:$0]  %s145, 128, %s2, [#allocation5], 64, 64, 4
    $region29: #{tpu_custom_call.1} parent=1 // pred_fallthru
      _
    // Predicated region
    $region30: #{tpu_custom_call.1} parent=1 // pred_check
      _
    $region31: #{tpu_custom_call.1} parent=1 // pred_check_branch
      %152 = sbr.rel (0) target = $region33
    $region32: #{tpu_custom_call.1} parent=1 // pred_region
      %153 = dma.done [#allocation5], 128
    $region33: #{tpu_custom_call.1} parent=1 // pred_fallthru
      _
    %154 = vsyncpa [#allocation4], 1
    %155 = vsyncpa [#allocation7], 1
    %156 = vsyncpa [#allocation5], 1

</llo_original>
